<compile_context>
chip_gen: v6e
topology: v6e:2x2x1
jax: 0.10.0
libtpu: 0.0.40
codegen_flags: <defaults>
</compile_context>

<pallas_src>
import math

import jax
import jax.numpy as jnp
from jax.experimental import pallas as pl
from jax.experimental.pallas import tpu as pltpu

LANES = 128
SUBLANES = 8


def _round_up(x, m):
    return ((x + m - 1) // m) * m


def _make_loss_kernel(threshold):
    """Builds the per-block kernel, specialized on the static threshold."""
    thr = None if threshold is None else float(threshold)
    thr_sq = None if thr is None else thr * thr

    def kernel(pred_ref, targ_ref, part_ref):
        # Do the math in f32 regardless of storage dtype (v5e VPU has no bf16 ALUs).
        p = pred_ref[...].astype(jnp.float32)
        t = targ_ref[...].astype(jnp.float32)
        d = p - t
        sq = d * d
        if thr is None:
            loss = sq
        else:
            loss = jnp.where(jnp.abs(d) < thr, sq, thr_sq)
        # Reduce (row_tile, 128) -> (8, 128): fold rows in vreg-aligned groups of
        # 8 sublanes and add them (pure VALU, no cross-lane reduce in-kernel).
        rt = loss.shape[0]
        part = loss.reshape(rt // SUBLANES, SUBLANES, LANES).sum(axis=0)
        part_ref[...] = part.reshape(1, SUBLANES, LANES)

    return kernel


def custom_loss(pred, targ, threshold=None, *, max_row_tile=4096):
    """Mean of thresholded squared error, matching CustomLoss.forward.

    `threshold` must be a static Python float (or None), mirroring the PyTorch
    module where it is fixed at construction time.
    """
    assert pred.shape == targ.shape, (pred.shape, targ.shape)
    n = math.prod(pred.shape)

    pf = pred.reshape(-1)
    tf = targ.reshape(-1)

    rows = pl.cdiv(n, LANES)
    num_blocks = max(1, pl.cdiv(rows, max_row_tile))
    row_tile = _round_up(pl.cdiv(rows, num_blocks), SUBLANES)
    rows_padded = num_blocks * row_tile
    n_padded = rows_padded * LANES
    pad = n_padded - n
    if pad:  # only materialize a padded copy when the size is not already aligned
        pf = jnp.pad(pf, (0, pad))
        tf = jnp.pad(tf, (0, pad))
    p2 = pf.reshape(rows_padded, LANES)
    t2 = tf.reshape(rows_padded, LANES)

    partials = pl.pallas_call(
        _make_loss_kernel(threshold),
        out_shape=jax.ShapeDtypeStruct((num_blocks, SUBLANES, LANES), jnp.float32),
        grid=(num_blocks,),
        in_specs=[
            pl.BlockSpec((row_tile, LANES), lambda i: (i, 0)),
            pl.BlockSpec((row_tile, LANES), lambda i: (i, 0)),
        ],
        out_specs=pl.BlockSpec((1, SUBLANES, LANES), lambda i: (i, 0, 0)),
        compiler_params=pltpu.CompilerParams(
            dimension_semantics=("parallel",)),
    )(p2, t2)

    # Padded elements have pred == targ == 0 -> diff 0; their per-element loss is
    # 0 unless threshold <= 0 (degenerate), where it would be threshold**2.
    if pad and threshold is not None and not (float(threshold) > 0.0):
        pad_correction = float(pad) * float(threshold) ** 2
    else:
        pad_correction = 0.0

    total = jnp.sum(partials, dtype=jnp.float32) - pad_correction
    mean = total / float(n)
    return mean.astype(pred.dtype)


if __name__ == "__main__":
    key = jax.random.PRNGKey(0)
    kp, kt = jax.random.split(key, 2)

    # Small NCHW-style prediction / target pair.
    pred = jax.random.normal(kp, (2, 4, 16, 16), dtype=jnp.float32)
    targ = jax.random.normal(kt, (2, 4, 16, 16), dtype=jnp.float32)
    threshold = 1.0

    # Thresholded (clipped) squared error and plain-MSE (threshold=None) paths.
    y_thr = jax.block_until_ready(custom_loss(pred, targ, threshold))
    y_mse = jax.block_until_ready(custom_loss(pred, targ, None))

    # Plain-JAX reference.
    d = pred - targ
    ref_thr = jnp.mean(jnp.where(jnp.abs(d) < threshold, d * d, threshold ** 2))
    ref_mse = jnp.mean(d * d)

    assert y_thr.shape == ()
    assert y_mse.shape == ()
    assert jnp.allclose(y_thr, ref_thr, atol=1e-5, rtol=1e-5)
    assert jnp.allclose(y_mse, ref_mse, atol=1e-5, rtol=1e-5)

    print("KERNEL_OK")
</pallas_src>

<mosaic_0001>
module attributes {stable_mosaic.version = 11 : i64} {
  func.func @kernel(%arg0: i32, %arg1: memref<16x128xf32, #tpu.memory_space<vmem>>, %arg2: memref<16x128xf32, #tpu.memory_space<vmem>>, %arg3: memref<1x8x128xf32, #tpu.memory_space<vmem>>) attributes {dimension_semantics = [#tpu.dimension_semantics<parallel>], iteration_bounds = array<i64: 1>, scalar_prefetch = 0 : i64, scratch_operands = 0 : i64, tpu.core_type = #tpu.core_type<tc>, window_params = [{transform_indices = @transform_0, window_bounds = array<i64: 16, 128>}, {transform_indices = @transform_1, window_bounds = array<i64: 16, 128>}, {transform_indices = @transform_2, window_bounds = array<i64: 1, 8, 128>}]} {
    %c0 = arith.constant 0 : index
    %c0_0 = arith.constant 0 : index
    %0 = vector.load %arg1[%c0, %c0_0] : memref<16x128xf32, #tpu.memory_space<vmem>>, vector<16x128xf32>
    %c0_1 = arith.constant 0 : index
    %c0_2 = arith.constant 0 : index
    %1 = vector.load %arg2[%c0_1, %c0_2] : memref<16x128xf32, #tpu.memory_space<vmem>>, vector<16x128xf32>
    %2 = arith.subf %0, %1 : vector<16x128xf32>
    %3 = arith.mulf %2, %2 : vector<16x128xf32>
    %4 = math.absf %2 : vector<16x128xf32>
    %cst = arith.constant 1.000000e+00 : f32
    %5 = vector.broadcast %cst : f32 to vector<16x128xf32>
    %6 = arith.cmpf olt, %4, %5 : vector<16x128xf32>
    %cst_3 = arith.constant 1.000000e+00 : f32
    %7 = vector.broadcast %cst_3 : f32 to vector<16x128xf32>
    %8 = arith.select %6, %3, %7 : vector<16x128xi1>, vector<16x128xf32>
    %9 = vector.shape_cast %8 : vector<16x128xf32> to vector<2x8x128xf32>
    %cst_4 = arith.constant dense<0.000000e+00> : vector<8x128xf32>
    %10 = vector.multi_reduction <add>, %9, %cst_4 [0] : vector<2x8x128xf32> to vector<8x128xf32>
    %11 = vector.shape_cast %10 : vector<8x128xf32> to vector<1x8x128xf32>
    %c0_5 = arith.constant 0 : index
    %c0_6 = arith.constant 0 : index
    %c0_7 = arith.constant 0 : index
    %12 = vector.load %arg3[%c0_5, %c0_6, %c0_7] : memref<1x8x128xf32, #tpu.memory_space<vmem>>, vector<1x8x128xf32>
    tpu.vector_store %arg3[%c0_5, %c0_6, %c0_7], %11 {strides = array<i32>} : memref<1x8x128xf32, #tpu.memory_space<vmem>>, vector<1x8x128xf32>,
    return
  }
  func.func @transform_0(%arg0: i32) -> (i32, i32) {
    %c0_i32 = arith.constant 0 : i32
    %c0_i32_0 = arith.constant 0 : i32
    return %arg0, %c0_i32 : i32, i32
  }
  func.func @transform_1(%arg0: i32) -> (i32, i32) {
    %c0_i32 = arith.constant 0 : i32
    %c0_i32_0 = arith.constant 0 : i32
    return %arg0, %c0_i32 : i32, i32
  }
  func.func @transform_2(%arg0: i32) -> (i32, i32, i32) {
    %c0_i32 = arith.constant 0 : i32
    %c0_i32_0 = arith.constant 0 : i32
    %c0_i32_1 = arith.constant 0 : i32
    return %arg0, %c0_i32, %c0_i32_0 : i32, i32, i32
  }
}

</mosaic_0001>

<llo_original>
// kernel: tpu_custom_call.1
$region0: #{tpu_custom_call.1}
  #allocation0 [shape = 'u32[]', space=smem, size = 0x4, offset = 0x4, fixed_abs, tag = 'smem constant byte address 0x4 - core index']
  #allocation1 [shape = 'u32[144,128]{1,0:T(1,128)}', space=vmem, size = 0x12000, scoped, tag = 'internal scratch']
  %s0 = inlined_call_operand.hbm [shape: f32[16,128], index: 0, kind: input, shape index: {}]
  %s1 = inlined_call_operand.hbm [shape: f32[16,128], index: 1, kind: input, shape index: {}]
  %s2 = inlined_call_operand.hbm [shape: f32[1,8,128], index: 2, kind: output, shape index: {}]
  %s3 = sld [smem:[#allocation0]]
  $region26: #{tpu_custom_call.1} parent=0
    _
  %s5 = ssub.s32 1, %s3
  %s6 = scalar_select 0, %s5, %s3
  $region1: #{tpu_custom_call.1} parent=0
    #allocation2 [shape = 'u8[8192]{0}', space=vmem, size = 0x2000, scoped, tag = 'input window, operand 0, single buffered']
    #allocation3 [shape = 's32[1]{0}', space=sflag, size = 0x4, scoped, tag = 'scoped memory for tpu_custom_call.1']
    #allocation4 [shape = 's32[1]{0}', space=sflag, size = 0x4, scoped, tag = 'scoped memory for tpu_custom_call.1']
    #allocation5 [shape = 'u8[8192]{0}', space=vmem, size = 0x2000, scoped, tag = 'input window, operand 1, single buffered']
    #allocation6 [shape = 's32[1]{0}', space=sflag, size = 0x4, scoped, tag = 'scoped memory for tpu_custom_call.1']
    #allocation7 [shape = 'u8[4096]{0}', space=vmem, size = 0x1000, scoped, tag = 'output window, operand 0, single buffered']
    %7 = vsyncpa [#allocation3], 0
    %8 = vsyncpa [#allocation6], 0
    %9 = vsyncpa [#allocation4], 0
    // Predicated region
    $region2: #{tpu_custom_call.1} parent=1 // pred_check
      _
    $region3: #{tpu_custom_call.1} parent=1 // pred_check_branch
      %11 = sbr.rel (0) target = $region5
    $region4: #{tpu_custom_call.1} parent=1 // pred_region
      %s13 = ssub.s32 256, 256
      %14 = vsyncadd [#allocation3], %s13
      %s15 = sshll.u32 [#allocation2], 4
      %s16 = int_to_ptr.vmem [resolvable:$true] %s15
      %21 = dma.hbm_to_vmem [thread:$0]  %s0, 256, %s16, [#allocation3], 128, 128, 8
    $region5: #{tpu_custom_call.1} parent=1 // pred_fallthru
      _
    // Predicated region
    $region6: #{tpu_custom_call.1} parent=1 // pred_check
      _
    $region7: #{tpu_custom_call.1} parent=1 // pred_check_branch
      %23 = sbr.rel (0) target = $region9
    $region8: #{tpu_custom_call.1} parent=1 // pred_region
      %s25 = ssub.s32 256, 256
      %26 = vsyncadd [#allocation6], %s25
      %s27 = sshll.u32 [#allocation5], 4
      %s28 = int_to_ptr.vmem [resolvable:$true] %s27
      %33 = dma.hbm_to_vmem [thread:$0]  %s1, 256, %s28, [#allocation6], 128, 128, 8
    $region9: #{tpu_custom_call.1} parent=1 // pred_fallthru
      _
    // Predicated region
    $region10: #{tpu_custom_call.1} parent=1 // pred_check
      _
    $region11: #{tpu_custom_call.1} parent=1 // pred_check_branch
      %35 = sbr.rel (0) target = $region13
    $region12: #{tpu_custom_call.1} parent=1 // pred_region
      %36 = dma.done [#allocation3], 256
    $region13: #{tpu_custom_call.1} parent=1 // pred_fallthru
      _
    // Predicated region
    $region14: #{tpu_custom_call.1} parent=1 // pred_check
      _
    $region15: #{tpu_custom_call.1} parent=1 // pred_check_branch
      %38 = sbr.rel (0) target = $region17
    $region16: #{tpu_custom_call.1} parent=1 // pred_region
      %39 = dma.done [#allocation6], 256
    $region17: #{tpu_custom_call.1} parent=1 // pred_fallthru
      _
    %v40 = vld [vmem:[#allocation2] sm:$0xff]
    %v41 = vld [vmem:[#allocation2 + $0x8] sm:$0xff]
    %v42 = vld [vmem:[#allocation5] sm:$0xff]
    %v43 = vld [vmem:[#allocation5 + $0x8] sm:$0xff]
    %v44 = vsub.f32 %v40, %v42
    %v45 = vsub.f32 %v41, %v43
    %v46 = vmul.f32 %v44, %v44
    %v47 = vmul.f32 %v45, %v45
    %v48 = vand.u32 2147483647, %v44
    %v49 = vand.u32 2147483647, %v45
    %vm50 = vcmp.lt.f32.partialorder %v48, 1.0
    %vm51 = vcmp.lt.f32.partialorder %v49, 1.0
    %v52 = vsel %vm50, %v46, 1.0
    %v53 = vsel %vm51, %v47, 1.0
    %v54 = vadd.f32 %v52, %v53
    %55 = vst [vmem:[#allocation7] sm:$0xff] %v54
    // Predicated region
    $region18: #{tpu_custom_call.1} parent=1 // pred_check
      _
    $region19: #{tpu_custom_call.1} parent=1 // pred_check_branch
      %57 = sbr.rel (0) target = $region21
    $region20: #{tpu_custom_call.1} parent=1 // pred_region
      %s59 = ssub.s32 128, 128
      %60 = vsyncadd [#allocation4], %s59
      %s62 = sshll.u32 [#allocation7], 4
      %s63 = int_to_ptr.vmem [resolvable:$true] %s62
      %65 = dma.vmem_to_hbm [thread:$0]  %s63, 128, %s2, [#allocation4]
    $region21: #{tpu_custom_call.1} parent=1 // pred_fallthru
      _
    // Predicated region
    $region22: #{tpu_custom_call.1} parent=1 // pred_check
      _
    $region23: #{tpu_custom_call.1} parent=1 // pred_check_branch
      %67 = sbr.rel (0) target = $region25
    $region24: #{tpu_custom_call.1} parent=1 // pred_region
      %68 = dma.done [#allocation4], 128
    $region25: #{tpu_custom_call.1} parent=1 // pred_fallthru
      _
    %69 = vsyncpa [#allocation3], 1
    %70 = vsyncpa [#allocation6], 1
    %71 = vsyncpa [#allocation4], 1

</llo_original>
